<compile_context>
chip_gen: v7x
topology: tpu7x:2x2x1
jax: 0.10.0
libtpu: 0.0.40
codegen_flags: <defaults>
</compile_context>

<pallas_src>
import math

import jax
import jax.numpy as jnp
from jax.experimental import pallas as pl
from jax.experimental.pallas import tpu as pltpu


def _attention_kernel(x_ref, wqkv_ref, o_ref):
    # x_ref:    (B*T, E)   -- whole batch, rows flattened
    # wqkv_ref: (E, 3*H)   -- fused [Wq | Wk | Wv]
    # o_ref:    (B, T, H)
    B, T, H = o_ref.shape

    x = x_ref[...]                       # [B*T, E]  f32
    wqkv = wqkv_ref[...]                 # [E, 3H]   f32

    # Single fused projection for the whole batch (one MXU pass).
    qkv = jnp.dot(x, wqkv, preferred_element_type=jnp.float32)    # [B*T, 3H]

    q = qkv[:, 0 * H:1 * H].reshape(B, T, H)
    k = qkv[:, 1 * H:2 * H].reshape(B, T, H)
    v = qkv[:, 2 * H:3 * H].reshape(B, T, H)

    # Batched QK^T contracting the last dim of both operands — no transposed k.
    scale = 1.0 / math.sqrt(H)
    scores = jnp.einsum("bth,bsh->bts", q, k,
                        preferred_element_type=jnp.float32) * scale  # [B,T,T]

    # Numerically stable softmax, all in f32.
    m = jnp.max(scores, axis=-1, keepdims=True)
    e = jnp.exp(scores - m)
    denom = jnp.sum(e, axis=-1, keepdims=True)
    probs = e * pl.reciprocal(denom, approx=True)                  # [B, T, T]

    out = jnp.einsum("bts,bsh->bth", probs, v,
                     preferred_element_type=jnp.float32)           # [B, T, H]
    o_ref[...] = out.astype(o_ref.dtype)


def self_attention_encoder(x, wq, wk, wv):
    """x: [B, T, E] f32; wq/wk/wv: [E, H] f32 -> [B, T, H]. (mask=None, encoder.)"""
    B, T, E = x.shape
    H = wq.shape[1]

    # Fuse the three projection weights into one [E, 3H] matmul operand and
    # flatten the batch so the projection runs once over all B*T rows.
    wqkv = jnp.concatenate([wq, wk, wv], axis=1)   # [E, 3H]
    x2d = x.reshape(B * T, E)

    return pl.pallas_call(
        _attention_kernel,
        out_shape=jax.ShapeDtypeStruct((B, T, H), x.dtype),
        # Single invocation, everything VMEM-resident: no grid, no per-step
        # index_map / DMA bookkeeping.
        in_specs=[
            pl.BlockSpec(memory_space=pltpu.MemorySpace.VMEM),
            pl.BlockSpec(memory_space=pltpu.MemorySpace.VMEM),
        ],
        out_specs=pl.BlockSpec(memory_space=pltpu.MemorySpace.VMEM),
    )(x2d, wqkv)


def reference_attention(x, wq, wk, wv):
    """Pure-JAX reference matching the PyTorch forward (eval mode, mask=None)."""
    q = jnp.einsum("bte,eh->bth", x, wq)
    k = jnp.einsum("bte,eh->bth", x, wk)
    v = jnp.einsum("bte,eh->bth", x, wv)
    scores = jnp.einsum("bth,bsh->bts", q, k) / math.sqrt(k.shape[-1])
    probs = jax.nn.softmax(scores, axis=-1)
    return jnp.einsum("bts,bsh->bth", probs, v)


if __name__ == "__main__":
    # embedding_size=32, head_size=16, block_size(seq T)=8, batch=2
    B, T, E, H = 2, 8, 32, 16

    key = jax.random.PRNGKey(0)
    kx, kq, kk, kv = jax.random.split(key, 4)

    x = jax.random.normal(kx, (B, T, E), dtype=jnp.float32)

    # Deterministic param init (uniform, like nn.Linear's default range).
    bound = 1.0 / math.sqrt(E)
    wq = jax.random.uniform(kq, (E, H), jnp.float32, -bound, bound)
    wk = jax.random.uniform(kk, (E, H), jnp.float32, -bound, bound)
    wv = jax.random.uniform(kv, (E, H), jnp.float32, -bound, bound)

    out = self_attention_encoder(x, wq, wk, wv)
    out = jax.block_until_ready(out)

    ref = reference_attention(x, wq, wk, wv)
    assert out.shape == (B, T, H)
    # approx=True reciprocal in the softmax denominator loosens the tolerance.
    assert jnp.allclose(out, ref, atol=2e-3, rtol=2e-3), "mismatch vs reference"

    print("KERNEL_OK")
</pallas_src>

<mosaic_0001>
module attributes {stable_mosaic.version = 11 : i64} {
  func.func @_attention_kernel(%arg0: memref<16x32xf32, #tpu.memory_space<vmem>>, %arg1: memref<32x48xf32, #tpu.memory_space<vmem>>, %arg2: memref<2x8x16xf32, #tpu.memory_space<vmem>>) attributes {dimension_semantics = [], scalar_prefetch = 0 : i64, scratch_operands = 0 : i64, tpu.core_type = #tpu.core_type<tc>} {
    %c0 = arith.constant 0 : index
    %c0_0 = arith.constant 0 : index
    %0 = vector.load %arg0[%c0, %c0_0] : memref<16x32xf32, #tpu.memory_space<vmem>>, vector<16x32xf32>
    %c0_1 = arith.constant 0 : index
    %c0_2 = arith.constant 0 : index
    %1 = vector.load %arg1[%c0_1, %c0_2] : memref<32x48xf32, #tpu.memory_space<vmem>>, vector<32x48xf32>
    %cst = arith.constant dense<0.000000e+00> : vector<16x48xf32>
    %2 = tpu.matmul %0, %1, %cst {dimension_numbers = #tpu.dot_dimension_numbers<[1], [0], [0], [1], [0, 0, 1, 1], [], []>} : vector<16x32xf32>, vector<32x48xf32>, vector<16x48xf32> -> vector<16x48xf32>
    %3 = vector.extract_strided_slice %2 {offsets = [0, 0], sizes = [16, 16], strides = [1, 1]} : vector<16x48xf32> to vector<16x16xf32>
    %4 = vector.shape_cast %3 : vector<16x16xf32> to vector<2x8x16xf32>
    %5 = vector.extract_strided_slice %2 {offsets = [0, 16], sizes = [16, 16], strides = [1, 1]} : vector<16x48xf32> to vector<16x16xf32>
    %6 = vector.shape_cast %5 : vector<16x16xf32> to vector<2x8x16xf32>
    %7 = vector.extract_strided_slice %2 {offsets = [0, 32], sizes = [16, 16], strides = [1, 1]} : vector<16x48xf32> to vector<16x16xf32>
    %8 = vector.shape_cast %7 : vector<16x16xf32> to vector<2x8x16xf32>
    "tpu.trace_start"() <{level = 10 : i32, message = "bth,bsh->bts"}> : () -> ()
    %cst_3 = arith.constant dense<0.000000e+00> : vector<2x8x8xf32>
    %9 = tpu.matmul %4, %6, %cst_3 {dimension_numbers = #tpu.dot_dimension_numbers<[2], [2], [1], [1], [0, 0, 0, 1, 1, 1], [0], [0]>} : vector<2x8x16xf32>, vector<2x8x16xf32>, vector<2x8x8xf32> -> vector<2x8x8xf32>
    "tpu.trace_stop"() : () -> ()
    %cst_4 = arith.constant 2.500000e-01 : f32
    %10 = vector.broadcast %cst_4 : f32 to vector<2x8x8xf32>
    %11 = arith.mulf %9, %10 : vector<2x8x8xf32>
    %cst_5 = arith.constant dense<0xFF800000> : vector<2x8xf32>
    %12 = vector.multi_reduction <maximumf>, %11, %cst_5 [2] : vector<2x8x8xf32> to vector<2x8xf32>
    %13 = vector.shape_cast %12 : vector<2x8xf32> to vector<2x8x1xf32>
    %14 = vector.broadcast %13 : vector<2x8x1xf32> to vector<2x8x8xf32>
    %15 = arith.subf %11, %14 : vector<2x8x8xf32>
    %16 = math.exp %15 : vector<2x8x8xf32>
    %cst_6 = arith.constant dense<0.000000e+00> : vector<2x8xf32>
    %17 = vector.multi_reduction <add>, %16, %cst_6 [2] : vector<2x8x8xf32> to vector<2x8xf32>
    %18 = vector.shape_cast %17 : vector<2x8xf32> to vector<2x8x1xf32>
    %19 = tpu.reciprocal %18 {approx = true} : vector<2x8x1xf32> -> vector<2x8x1xf32>
    %20 = vector.broadcast %19 : vector<2x8x1xf32> to vector<2x8x8xf32>
    %21 = arith.mulf %16, %20 : vector<2x8x8xf32>
    "tpu.trace_start"() <{level = 10 : i32, message = "bts,bsh->bth"}> : () -> ()
    %cst_7 = arith.constant dense<0.000000e+00> : vector<2x8x16xf32>
    %22 = tpu.matmul %21, %8, %cst_7 {dimension_numbers = #tpu.dot_dimension_numbers<[2], [1], [1], [2], [0, 0, 0, 1, 1, 2], [0], [0]>} : vector<2x8x8xf32>, vector<2x8x16xf32>, vector<2x8x16xf32> -> vector<2x8x16xf32>
    "tpu.trace_stop"() : () -> ()
    %c0_8 = arith.constant 0 : index
    %c0_9 = arith.constant 0 : index
    %c0_10 = arith.constant 0 : index
    %23 = vector.load %arg2[%c0_8, %c0_9, %c0_10] : memref<2x8x16xf32, #tpu.memory_space<vmem>>, vector<2x8x16xf32>
    tpu.vector_store %arg2[%c0_8, %c0_9, %c0_10], %22 {strides = array<i32>} : memref<2x8x16xf32, #tpu.memory_space<vmem>>, vector<2x8x16xf32>,
    return
  }
}

</mosaic_0001>

<llo_original>
// kernel: tpu_custom_call.1
$region0: #{tpu_custom_call.1}
  #allocation0 [shape = 'u32[]', space=smem, size = 0x4, offset = 0x4, fixed_abs, tag = 'smem constant byte address 0x4 - core index']
  #allocation1 [shape = 'u32[144,128]{1,0:T(1,128)}', space=vmem, size = 0x12000, scoped, tag = 'internal scratch']
  %s0 = inlined_call_operand.hbm [shape: f32[16,32], index: 0, kind: input, shape index: {}]
  %s1 = inlined_call_operand.hbm [shape: f32[32,48], index: 1, kind: input, shape index: {}]
  %s2 = inlined_call_operand.hbm [shape: f32[2,8,16], index: 2, kind: output, shape index: {}]
  %s3 = sld [smem:[#allocation0]]
  $region26: #{tpu_custom_call.1} parent=0
    _
  %s5 = ssub.s32 1, %s3
  %s6 = scalar_select 0, %s5, %s3
  $region1: #{tpu_custom_call.1} parent=0
    #allocation2 [shape = 'u8[8192]{0}', space=vmem, size = 0x2000, scoped, tag = 'input window, operand 0, single buffered']
    #allocation3 [shape = 's32[1]{0}', space=sflag, size = 0x4, scoped, tag = 'scoped memory for tpu_custom_call.1']
    #allocation4 [shape = 's32[1]{0}', space=sflag, size = 0x4, scoped, tag = 'scoped memory for tpu_custom_call.1']
    #allocation5 [shape = 'u8[16384]{0}', space=vmem, size = 0x4000, scoped, tag = 'input window, operand 1, single buffered']
    #allocation6 [shape = 's32[1]{0}', space=sflag, size = 0x4, scoped, tag = 'scoped memory for tpu_custom_call.1']
    #allocation7 [shape = 'u8[8192]{0}', space=vmem, size = 0x2000, scoped, tag = 'output window, operand 0, single buffered']
    %7 = vsyncpa [#allocation3], 0
    %8 = vsyncpa [#allocation6], 0
    %9 = vsyncpa [#allocation4], 0
    // Predicated region
    $region2: #{tpu_custom_call.1} parent=1 // pred_check
      _
    $region3: #{tpu_custom_call.1} parent=1 // pred_check_branch
      %11 = sbr.rel (0) target = $region5
    $region4: #{tpu_custom_call.1} parent=1 // pred_region
      %s13 = ssub.s32 256, 256
      %14 = vsyncadd [#allocation3], %s13
      %s15 = sshll.u32 [#allocation2], 4
      %s16 = int_to_ptr.vmem [resolvable:$true] %s15
      %21 = dma.hbm_to_vmem [thread:$0]  %s0, 256, %s16, [#allocation3], 128, 128, 8
    $region5: #{tpu_custom_call.1} parent=1 // pred_fallthru
      _
    // Predicated region
    $region6: #{tpu_custom_call.1} parent=1 // pred_check
      _
    $region7: #{tpu_custom_call.1} parent=1 // pred_check_branch
      %23 = sbr.rel (0) target = $region9
    $region8: #{tpu_custom_call.1} parent=1 // pred_region
      %s25 = ssub.s32 512, 512
      %26 = vsyncadd [#allocation6], %s25
      %s27 = sshll.u32 [#allocation5], 4
      %s28 = int_to_ptr.vmem [resolvable:$true] %s27
      %33 = dma.hbm_to_vmem [thread:$0]  %s1, 512, %s28, [#allocation6], 128, 128, 8
    $region9: #{tpu_custom_call.1} parent=1 // pred_fallthru
      _
    // Predicated region
    $region10: #{tpu_custom_call.1} parent=1 // pred_check
      _
    $region11: #{tpu_custom_call.1} parent=1 // pred_check_branch
      %35 = sbr.rel (0) target = $region13
    $region12: #{tpu_custom_call.1} parent=1 // pred_region
      %36 = dma.done [#allocation3], 256
    $region13: #{tpu_custom_call.1} parent=1 // pred_fallthru
      _
    // Predicated region
    $region14: #{tpu_custom_call.1} parent=1 // pred_check
      _
    $region15: #{tpu_custom_call.1} parent=1 // pred_check_branch
      %38 = sbr.rel (0) target = $region17
    $region16: #{tpu_custom_call.1} parent=1 // pred_region
      %39 = dma.done [#allocation6], 512
    $region17: #{tpu_custom_call.1} parent=1 // pred_fallthru
      _
    %v40 = vld [vmem:[#allocation2] sm:$0xff]
    %v41 = vld [vmem:[#allocation2 + $0x8] sm:$0xff]
    %v42 = vld [vmem:[#allocation5] sm:$0xff]
    %v43 = vld [vmem:[#allocation5 + $0x8] sm:$0xff]
    %v44 = vld [vmem:[#allocation5 + $0x10] sm:$0xff]
    %v45 = vld [vmem:[#allocation5 + $0x18] sm:$0xff]
    %vm46 = vcmask 261120
    %v48 = vsel %vm46, %v40, 0
    %v51 = vsel %vm46, %v41, 0
    %53 = vmatprep.subr.mxu0 0.0
    %54 = vmatpush1.msra.mxu0 %v42
    %55 = vmatprep.subr.mxu0 0.0
    %56 = vmatpush1.msra.mxu0 %v43
    %57 = vmatprep.subr.mxu0 0.0
    %58 = vmatpush1.msra.mxu0 %v44
    %59 = vmatprep.subr.mxu0 0.0
    %60 = vmatpush1.msra.mxu0 %v45
    %61 = vmatprep.subr.mxu0 0.0
    %62 = vmatpush1.msra.mxu0 0.0
    %63 = vmatprep.subr.mxu0 0.0
    %64 = vmatpush1.msra.mxu0 0.0
    %65 = vmatprep.subr.mxu0 0.0
    %66 = vmatpush1.msra.mxu0 0.0
    %67 = vmatprep.subr.mxu0 0.0
    %68 = vmatpush1.msra.mxu0 0.0
    %69 = vmatprep.subr.mxu0 0.0
    %70 = vmatpush1.msra.mxu0 0.0
    %71 = vmatprep.subr.mxu0 0.0
    %72 = vmatpush1.msra.mxu0 0.0
    %73 = vmatprep.subr.mxu0 0.0
    %74 = vmatpush1.msra.mxu0 0.0
    %75 = vmatprep.subr.mxu0 0.0
    %76 = vmatpush1.msra.mxu0 0.0
    %77 = vmatprep.subr.mxu0 0.0
    %78 = vmatpush1.msra.mxu0 0.0
    %79 = vmatprep.subr.mxu0 0.0
    %80 = vmatpush1.msra.mxu0 0.0
    %81 = vmatprep.subr.mxu0 0.0
    %82 = vmatpush1.msra.mxu0 0.0
    %83 = vmatprep.subr.mxu0 0.0
    %84 = vmatpush1.msra.mxu0 0.0
    %85 = vmatprep.subr.mxu0 0.0
    %86 = vmatpush1.msra.mxu0 0.0
    %87 = vmatprep.subr.mxu0 0.0
    %88 = vmatpush1.msra.mxu0 0.0
    %89 = vmatprep.subr.mxu0 0.0
    %90 = vmatpush1.msra.mxu0 0.0
    %91 = vmatprep.subr.mxu0 0.0
    %92 = vmatpush1.msra.mxu0 0.0
    %93 = vmatprep.subr.mxu0 0.0
    %94 = vmatpush1.msra.mxu0 0.0
    %95 = vmatprep.subr.mxu0 0.0
    %96 = vmatpush1.msra.mxu0 0.0
    %97 = vmatprep.subr.mxu0 0.0
    %98 = vmatpush1.msra.mxu0 0.0
    %99 = vmatprep.subr.mxu0 0.0
    %100 = vmatpush1.msra.mxu0 0.0
    %101 = vmatprep.subr.mxu0 0.0
    %102 = vmatpush1.msra.mxu0 0.0
    %103 = vmatprep.subr.mxu0 0.0
    %104 = vmatpush1.msra.mxu0 0.0
    %105 = vmatprep.subr.mxu0 0.0
    %106 = vmatpush1.msra.mxu0 0.0
    %107 = vmatprep.subr.mxu0 0.0
    %108 = vmatpush1.msra.mxu0 0.0
    %109 = vmatprep.subr.mxu0 0.0
    %110 = vmatpush1.msra.mxu0 0.0
    %111 = vmatprep.subr.mxu0 0.0
    %112 = vmatpush1.msra.mxu0 0.0
    %113 = vmatprep.subr.mxu0 0.0
    %114 = vmatpush1.msra.mxu0 0.0
    %115 = vmatprep.subr.mxu0 0.0
    %116 = vmatpush1.msra.mxu0 0.0
    %117 = vmatprep.mubr.f32.mxu0 0.0
    %118 = vmatmul.mubr.f32.gmra.mrb[0].mxu0 %v48
    %v119 = vpop.f32.mrb[0].mxu0
    %v120 = vadd.f32 0.0, %v119
    %v121 = vpop.f32.mrb[0].mxu0
    %122 = vmatprep.mubr.f32.mxu0 0.0
    %123 = vmatmul.mubr.f32.gmra.mrb[0].mxu0 %v51
    %v124 = vpop.f32.mrb[0].mxu0
    %v125 = vadd.f32 0.0, %v124
    %v126 = vpop.f32.mrb[0].mxu0
    %127 = vdwg.mxu0
    %129 = vrot.lane.b32.xlu0 %v120, 112
    %v130 = vpop.permute.xlu0 %129
    %vm131 = vcmask 130048
    %v132 = vsel %vm131, %v120, 0
    %v134 = vsel %vm131, %v130, 0
    %136 = vmatprep.subr.mxu0 0.0
    %137 = vmatpush1.xpose.msra.mxu0 %v134
    %138 = vmatprep.subr.mxu0 0.0
    %139 = vmatpush1.xpose.msra.mxu0 0.0
    %140 = vmatprep.subr.mxu0 0.0
    %141 = vmatpush1.xpose.msra.mxu0 0.0
    %142 = vmatprep.subr.mxu0 0.0
    %143 = vmatpush1.xpose.msra.mxu0 0.0
    %144 = vmatprep.subr.mxu0 0.0
    %145 = vmatpush1.xpose.msra.mxu0 0.0
    %146 = vmatprep.subr.mxu0 0.0
    %147 = vmatpush1.xpose.msra.mxu0 0.0
    %148 = vmatprep.subr.mxu0 0.0
    %149 = vmatpush1.xpose.msra.mxu0 0.0
    %150 = vmatprep.subr.mxu0 0.0
    %151 = vmatpush1.xpose.msra.mxu0 0.0
    %152 = vmatprep.subr.mxu0 0.0
    %153 = vmatpush1.xpose.msra.mxu0 0.0
    %154 = vmatprep.subr.mxu0 0.0
    %155 = vmatpush1.xpose.msra.mxu0 0.0
    %156 = vmatprep.subr.mxu0 0.0
    %157 = vmatpush1.xpose.msra.mxu0 0.0
    %158 = vmatprep.subr.mxu0 0.0
    %159 = vmatpush1.xpose.msra.mxu0 0.0
    %160 = vmatprep.subr.mxu0 0.0
    %161 = vmatpush1.xpose.msra.mxu0 0.0
    %162 = vmatprep.subr.mxu0 0.0
    %163 = vmatpush1.xpose.msra.mxu0 0.0
    %164 = vmatprep.subr.mxu0 0.0
    %165 = vmatpush1.xpose.msra.mxu0 0.0
    %166 = vmatprep.subr.mxu0 0.0
    %167 = vmatpush1.xpose.msra.mxu0 0.0
    %168 = vmatprep.subr.mxu0 0.0
    %169 = vmatpush1.xpose.msra.mxu0 0.0
    %170 = vmatprep.subr.mxu0 0.0
    %171 = vmatpush1.xpose.msra.mxu0 0.0
    %172 = vmatprep.subr.mxu0 0.0
    %173 = vmatpush1.xpose.msra.mxu0 0.0
    %174 = vmatprep.subr.mxu0 0.0
    %175 = vmatpush1.xpose.msra.mxu0 0.0
    %176 = vmatprep.subr.mxu0 0.0
    %177 = vmatpush1.xpose.msra.mxu0 0.0
    %178 = vmatprep.subr.mxu0 0.0
    %179 = vmatpush1.xpose.msra.mxu0 0.0
    %180 = vmatprep.subr.mxu0 0.0
    %181 = vmatpush1.xpose.msra.mxu0 0.0
    %182 = vmatprep.subr.mxu0 0.0
    %183 = vmatpush1.xpose.msra.mxu0 0.0
    %184 = vmatprep.subr.mxu0 0.0
    %185 = vmatpush1.xpose.msra.mxu0 0.0
    %186 = vmatprep.subr.mxu0 0.0
    %187 = vmatpush1.xpose.msra.mxu0 0.0
    %188 = vmatprep.subr.mxu0 0.0
    %189 = vmatpush1.xpose.msra.mxu0 0.0
    %190 = vmatprep.subr.mxu0 0.0
    %191 = vmatpush1.xpose.msra.mxu0 0.0
    %192 = vmatprep.subr.mxu0 0.0
    %193 = vmatpush1.xpose.msra.mxu0 0.0
    %194 = vmatprep.subr.mxu0 0.0
    %195 = vmatpush1.xpose.msra.mxu0 0.0
    %196 = vmatprep.subr.mxu0 0.0
    %197 = vmatpush1.xpose.msra.mxu0 0.0
    %198 = vmatprep.subr.mxu0 0.0
    %199 = vmatpush1.xpose.msra.mxu0 0.0
    %200 = vmatprep.mubr.f32.mxu0 0.0
    %201 = vmatmul.mubr.f32.gmra.mrb[0].mxu0 %v132
    %v202 = vpop.f32.mrb[0].mxu0
    %v203 = vadd.f32 0.0, %v202
    %v204 = vpop.f32.mrb[0].mxu0
    %205 = vdwg.mxu0
    %207 = vrot.lane.b32.xlu0 %v125, 112
    %v208 = vpop.permute.xlu0 %207
    %v209 = vsel %vm131, %v125, 0
    %v211 = vsel %vm131, %v208, 0
    %213 = vmatprep.subr.mxu0 0.0
    %214 = vmatpush1.xpose.msra.mxu0 %v211
    %215 = vmatprep.subr.mxu0 0.0
    %216 = vmatpush1.xpose.msra.mxu0 0.0
    %217 = vmatprep.subr.mxu0 0.0
    %218 = vmatpush1.xpose.msra.mxu0 0.0
    %219 = vmatprep.subr.mxu0 0.0
    %220 = vmatpush1.xpose.msra.mxu0 0.0
    %221 = vmatprep.subr.mxu0 0.0
    %222 = vmatpush1.xpose.msra.mxu0 0.0
    %223 = vmatprep.subr.mxu0 0.0
    %224 = vmatpush1.xpose.msra.mxu0 0.0
    %225 = vmatprep.subr.mxu0 0.0
    %226 = vmatpush1.xpose.msra.mxu0 0.0
    %227 = vmatprep.subr.mxu0 0.0
    %228 = vmatpush1.xpose.msra.mxu0 0.0
    %229 = vmatprep.subr.mxu0 0.0
    %230 = vmatpush1.xpose.msra.mxu0 0.0
    %231 = vmatprep.subr.mxu0 0.0
    %232 = vmatpush1.xpose.msra.mxu0 0.0
    %233 = vmatprep.subr.mxu0 0.0
    %234 = vmatpush1.xpose.msra.mxu0 0.0
    %235 = vmatprep.subr.mxu0 0.0
    %236 = vmatpush1.xpose.msra.mxu0 0.0
    %237 = vmatprep.subr.mxu0 0.0
    %238 = vmatpush1.xpose.msra.mxu0 0.0
    %239 = vmatprep.subr.mxu0 0.0
    %240 = vmatpush1.xpose.msra.mxu0 0.0
    %241 = vmatprep.subr.mxu0 0.0
    %242 = vmatpush1.xpose.msra.mxu0 0.0
    %243 = vmatprep.subr.mxu0 0.0
    %244 = vmatpush1.xpose.msra.mxu0 0.0
    %245 = vmatprep.subr.mxu0 0.0
    %246 = vmatpush1.xpose.msra.mxu0 0.0
    %247 = vmatprep.subr.mxu0 0.0
    %248 = vmatpush1.xpose.msra.mxu0 0.0
    %249 = vmatprep.subr.mxu0 0.0
    %250 = vmatpush1.xpose.msra.mxu0 0.0
    %251 = vmatprep.subr.mxu0 0.0
    %252 = vmatpush1.xpose.msra.mxu0 0.0
    %253 = vmatprep.subr.mxu0 0.0
    %254 = vmatpush1.xpose.msra.mxu0 0.0
    %255 = vmatprep.subr.mxu0 0.0
    %256 = vmatpush1.xpose.msra.mxu0 0.0
    %257 = vmatprep.subr.mxu0 0.0
    %258 = vmatpush1.xpose.msra.mxu0 0.0
    %259 = vmatprep.subr.mxu0 0.0
    %260 = vmatpush1.xpose.msra.mxu0 0.0
    %261 = vmatprep.subr.mxu0 0.0
    %262 = vmatpush1.xpose.msra.mxu0 0.0
    %263 = vmatprep.subr.mxu0 0.0
    %264 = vmatpush1.xpose.msra.mxu0 0.0
    %265 = vmatprep.subr.mxu0 0.0
    %266 = vmatpush1.xpose.msra.mxu0 0.0
    %267 = vmatprep.subr.mxu0 0.0
    %268 = vmatpush1.xpose.msra.mxu0 0.0
    %269 = vmatprep.subr.mxu0 0.0
    %270 = vmatpush1.xpose.msra.mxu0 0.0
    %271 = vmatprep.subr.mxu0 0.0
    %272 = vmatpush1.xpose.msra.mxu0 0.0
    %273 = vmatprep.subr.mxu0 0.0
    %274 = vmatpush1.xpose.msra.mxu0 0.0
    %275 = vmatprep.subr.mxu0 0.0
    %276 = vmatpush1.xpose.msra.mxu0 0.0
    %277 = vmatprep.mubr.f32.mxu0 0.0
    %278 = vmatmul.mubr.f32.gmra.mrb[0].mxu0 %v209
    %v279 = vpop.f32.mrb[0].mxu0
    %v280 = vadd.f32 0.0, %v279
    %v281 = vpop.f32.mrb[0].mxu0
    %282 = vdwg.mxu0
    %v283 = vmul.f32 %v203, 0.25
    %v284 = vmul.f32 %v280, 0.25
    %vm285 = vcmask 64512
    %v286 = vsel %vm285, %v283, -inf
    %287 = vmax.xlane.f32.xlu0 %v286
    %v288 = vpop.xlane.xlu0 %287
    %v289 = vsel %vm285, %v284, -inf
    %290 = vmax.xlane.f32.xlu0 %v289
    %v291 = vpop.xlane.xlu0 %290
    %v292 = vsub.f32 %v283, %v288
    %v293 = vsub.f32 %v284, %v291
    %v294 = vmul.f32 %v292, 1.442695
    %v295 = vpow.pop %v294
    %v296 = vmul.f32 %v293, 1.442695
    %v297 = vpow.pop %v296
    %v298 = vsel %vm285, %v295, 0.0
    %299 = vadd.xlane.f32.xlu0 %v298
    %v300 = vpop.xlane.xlu0 %299
    %v301 = vsel %vm285, %v297, 0.0
    %302 = vadd.xlane.f32.xlu0 %v301
    %v303 = vpop.xlane.xlu0 %302
    %v304 = vrcp.pop %v300
    %v305 = vrcp.pop %v303
    %v306 = vmul.f32 %v295, %v304
    %v307 = vmul.f32 %v297, %v305
    %308 = vrot.lane.b32.xlu0 %v120, 96
    %v309 = vpop.permute.xlu0 %308
    %v312 = vsel %vm285, %v306, 0
    %314 = vmatprep.subr.mxu0 0.0
    %315 = vmatpush1.msra.mxu0 %v309
    %316 = vmatprep.subr.mxu0 0.0
    %317 = vmatpush1.msra.mxu0 0.0
    %318 = vmatprep.subr.mxu0 0.0
    %319 = vmatpush1.msra.mxu0 0.0
    %320 = vmatprep.subr.mxu0 0.0
    %321 = vmatpush1.msra.mxu0 0.0
    %322 = vmatprep.subr.mxu0 0.0
    %323 = vmatpush1.msra.mxu0 0.0
    %324 = vmatprep.subr.mxu0 0.0
    %325 = vmatpush1.msra.mxu0 0.0
    %326 = vmatprep.subr.mxu0 0.0
    %327 = vmatpush1.msra.mxu0 0.0
    %328 = vmatprep.subr.mxu0 0.0
    %329 = vmatpush1.msra.mxu0 0.0
    %330 = vmatprep.subr.mxu0 0.0
    %331 = vmatpush1.msra.mxu0 0.0
    %332 = vmatprep.subr.mxu0 0.0
    %333 = vmatpush1.msra.mxu0 0.0
    %334 = vmatprep.subr.mxu0 0.0
    %335 = vmatpush1.msra.mxu0 0.0
    %336 = vmatprep.subr.mxu0 0.0
    %337 = vmatpush1.msra.mxu0 0.0
    %338 = vmatprep.subr.mxu0 0.0
    %339 = vmatpush1.msra.mxu0 0.0
    %340 = vmatprep.subr.mxu0 0.0
    %341 = vmatpush1.msra.mxu0 0.0
    %342 = vmatprep.subr.mxu0 0.0
    %343 = vmatpush1.msra.mxu0 0.0
    %344 = vmatprep.subr.mxu0 0.0
    %345 = vmatpush1.msra.mxu0 0.0
    %346 = vmatprep.subr.mxu0 0.0
    %347 = vmatpush1.msra.mxu0 0.0
    %348 = vmatprep.subr.mxu0 0.0
    %349 = vmatpush1.msra.mxu0 0.0
    %350 = vmatprep.subr.mxu0 0.0
    %351 = vmatpush1.msra.mxu0 0.0
    %352 = vmatprep.subr.mxu0 0.0
    %353 = vmatpush1.msra.mxu0 0.0
    %354 = vmatprep.subr.mxu0 0.0
    %355 = vmatpush1.msra.mxu0 0.0
    %356 = vmatprep.subr.mxu0 0.0
    %357 = vmatpush1.msra.mxu0 0.0
    %358 = vmatprep.subr.mxu0 0.0
    %359 = vmatpush1.msra.mxu0 0.0
    %360 = vmatprep.subr.mxu0 0.0
    %361 = vmatpush1.msra.mxu0 0.0
    %362 = vmatprep.subr.mxu0 0.0
    %363 = vmatpush1.msra.mxu0 0.0
    %364 = vmatprep.subr.mxu0 0.0
    %365 = vmatpush1.msra.mxu0 0.0
    %366 = vmatprep.subr.mxu0 0.0
    %367 = vmatpush1.msra.mxu0 0.0
    %368 = vmatprep.subr.mxu0 0.0
    %369 = vmatpush1.msra.mxu0 0.0
    %370 = vmatprep.subr.mxu0 0.0
    %371 = vmatpush1.msra.mxu0 0.0
    %372 = vmatprep.subr.mxu0 0.0
    %373 = vmatpush1.msra.mxu0 0.0
    %374 = vmatprep.subr.mxu0 0.0
    %375 = vmatpush1.msra.mxu0 0.0
    %376 = vmatprep.subr.mxu0 0.0
    %377 = vmatpush1.msra.mxu0 0.0
    %378 = vmatprep.mubr.f32.mxu0 0.0
    %379 = vmatmul.mubr.f32.gmra.mrb[0].mxu0 %v312
    %v380 = vpop.f32.mrb[0].mxu0
    %v381 = vadd.f32 0.0, %v380
    %v382 = vpop.f32.mrb[0].mxu0
    %383 = vdwg.mxu0
    %384 = vrot.lane.b32.xlu0 %v125, 96
    %v385 = vpop.permute.xlu0 %384
    %v388 = vsel %vm285, %v307, 0
    %390 = vmatprep.subr.mxu0 0.0
    %391 = vmatpush1.msra.mxu0 %v385
    %392 = vmatprep.subr.mxu0 0.0
    %393 = vmatpush1.msra.mxu0 0.0
    %394 = vmatprep.subr.mxu0 0.0
    %395 = vmatpush1.msra.mxu0 0.0
    %396 = vmatprep.subr.mxu0 0.0
    %397 = vmatpush1.msra.mxu0 0.0
    %398 = vmatprep.subr.mxu0 0.0
    %399 = vmatpush1.msra.mxu0 0.0
    %400 = vmatprep.subr.mxu0 0.0
    %401 = vmatpush1.msra.mxu0 0.0
    %402 = vmatprep.subr.mxu0 0.0
    %403 = vmatpush1.msra.mxu0 0.0
    %404 = vmatprep.subr.mxu0 0.0
    %405 = vmatpush1.msra.mxu0 0.0
    %406 = vmatprep.subr.mxu0 0.0
    %407 = vmatpush1.msra.mxu0 0.0
    %408 = vmatprep.subr.mxu0 0.0
    %409 = vmatpush1.msra.mxu0 0.0
    %410 = vmatprep.subr.mxu0 0.0
    %411 = vmatpush1.msra.mxu0 0.0
    %412 = vmatprep.subr.mxu0 0.0
    %413 = vmatpush1.msra.mxu0 0.0
    %414 = vmatprep.subr.mxu0 0.0
    %415 = vmatpush1.msra.mxu0 0.0
    %416 = vmatprep.subr.mxu0 0.0
    %417 = vmatpush1.msra.mxu0 0.0
    %418 = vmatprep.subr.mxu0 0.0
    %419 = vmatpush1.msra.mxu0 0.0
    %420 = vmatprep.subr.mxu0 0.0
    %421 = vmatpush1.msra.mxu0 0.0
    %422 = vmatprep.subr.mxu0 0.0
    %423 = vmatpush1.msra.mxu0 0.0
    %424 = vmatprep.subr.mxu0 0.0
    %425 = vmatpush1.msra.mxu0 0.0
    %426 = vmatprep.subr.mxu0 0.0
    %427 = vmatpush1.msra.mxu0 0.0
    %428 = vmatprep.subr.mxu0 0.0
    %429 = vmatpush1.msra.mxu0 0.0
    %430 = vmatprep.subr.mxu0 0.0
    %431 = vmatpush1.msra.mxu0 0.0
    %432 = vmatprep.subr.mxu0 0.0
    %433 = vmatpush1.msra.mxu0 0.0
    %434 = vmatprep.subr.mxu0 0.0
    %435 = vmatpush1.msra.mxu0 0.0
    %436 = vmatprep.subr.mxu0 0.0
    %437 = vmatpush1.msra.mxu0 0.0
    %438 = vmatprep.subr.mxu0 0.0
    %439 = vmatpush1.msra.mxu0 0.0
    %440 = vmatprep.subr.mxu0 0.0
    %441 = vmatpush1.msra.mxu0 0.0
    %442 = vmatprep.subr.mxu0 0.0
    %443 = vmatpush1.msra.mxu0 0.0
    %444 = vmatprep.subr.mxu0 0.0
    %445 = vmatpush1.msra.mxu0 0.0
    %446 = vmatprep.subr.mxu0 0.0
    %447 = vmatpush1.msra.mxu0 0.0
    %448 = vmatprep.subr.mxu0 0.0
    %449 = vmatpush1.msra.mxu0 0.0
    %450 = vmatprep.subr.mxu0 0.0
    %451 = vmatpush1.msra.mxu0 0.0
    %452 = vmatprep.subr.mxu0 0.0
    %453 = vmatpush1.msra.mxu0 0.0
    %454 = vmatprep.mubr.f32.mxu0 0.0
    %455 = vmatmul.mubr.f32.gmra.mrb[0].mxu0 %v388
    %v456 = vpop.f32.mrb[0].mxu0
    %v457 = vadd.f32 0.0, %v456
    %v458 = vpop.f32.mrb[0].mxu0
    %459 = vdwg.mxu0
    %460 = vst.msk [vmem:[#allocation7] sm:$0xff] %vm131, %v381
    %461 = vst.msk [vmem:[#allocation7 + $0x8] sm:$0xff] %vm131, %v457
    // Predicated region
    $region18: #{tpu_custom_call.1} parent=1 // pred_check
      _
    $region19: #{tpu_custom_call.1} parent=1 // pred_check_branch
      %463 = sbr.rel (0) target = $region21
    $region20: #{tpu_custom_call.1} parent=1 // pred_region
      %s465 = ssub.s32 256, 256
      %466 = vsyncadd [#allocation4], %s465
      %s467 = sshll.u32 [#allocation7], 4
      %s468 = int_to_ptr.vmem [resolvable:$true] %s467
      %473 = dma.vmem_to_hbm [thread:$0]  %s468, 256, %s2, [#allocation4], 128, 128, 8
    $region21: #{tpu_custom_call.1} parent=1 // pred_fallthru
      _
    // Predicated region
    $region22: #{tpu_custom_call.1} parent=1 // pred_check
      _
    $region23: #{tpu_custom_call.1} parent=1 // pred_check_branch
      %475 = sbr.rel (0) target = $region25
    $region24: #{tpu_custom_call.1} parent=1 // pred_region
      %476 = dma.done [#allocation4], 256
    $region25: #{tpu_custom_call.1} parent=1 // pred_fallthru
      _
    %477 = vsyncpa [#allocation3], 1
    %478 = vsyncpa [#allocation6], 1
    %479 = vsyncpa [#allocation4], 1

</llo_original>
